<compile_context>
chip_gen: v6e
topology: v6e:2x2x1
jax: 0.10.0
libtpu: 0.0.40
codegen_flags: <defaults>
</compile_context>

<pallas_src>
import functools

import jax
import jax.numpy as jnp
from jax.experimental import pallas as pl
from jax.experimental.pallas import tpu as pltpu


def _round_up(x, m):
    return (x + m - 1) // m * m


def _leaky_relu(x, slope=0.01):
    return jnp.where(x > 0, x, slope * x)


def actor_kernel(obs_ref, w1_ref, b1_ref, w2_ref, b2_ref, w3_ref, b3_ref, out_ref):
    # Matmul operands are bf16 (MXU native path); accumulate in f32 and keep
    # all elementwise math in f32.
    x = obs_ref[...]  # bf16 (tile, dim_obs)

    h1 = jnp.dot(x, w1_ref[...], preferred_element_type=jnp.float32) + b1_ref[...]
    h1 = _leaky_relu(h1)  # (tile, 128) f32

    h2 = jnp.dot(h1.astype(jnp.bfloat16), w2_ref[...],
                 preferred_element_type=jnp.float32) + b2_ref[...]
    h2 = _leaky_relu(h2)  # (tile, 128) f32 (cols >= 64 are exactly 0)

    logits = jnp.dot(h2.astype(jnp.bfloat16), w3_ref[...],
                     preferred_element_type=jnp.float32) + b3_ref[...]
    a = jnp.tanh(logits)

    # action_normalize: shift to [0, 1], renormalize to sum to 1 over actions.
    # Padded action lanes have bias -1e4 -> tanh = -1 -> exactly 0 after the
    # shift, so they do not contribute to the sum.  Exact division keeps each
    # row summing to 1 within f32 rounding (one divide per row is negligible).
    a = (a + 1.0) * 0.5
    denom = jnp.sum(a, axis=-1, keepdims=True)
    a = a / denom

    out_ref[...] = a.astype(out_ref.dtype)  # lane-dense (tile, 128k) store


@functools.partial(jax.jit, static_argnames=("batch_tile",))
def actor_forward(obs, params, *, batch_tile=None):
    """obs: (B, dim_obs) float32. params: dict of transposed weights/biases."""
    B, dim_obs = obs.shape
    dim_action = params["w3"].shape[1]

    # --- tile sizing: one grid step for small batches, 512-row tiles for big
    # ones (keeps the grid megacore-friendly on v7x's two TensorCores).
    if batch_tile is None:
        batch_tile = _round_up(B, 16) if B <= 1024 else 512
    batch_tile = _round_up(int(batch_tile), 16)  # bf16 sublane packing (16,128)
    B_pad = _round_up(B, batch_tile)

    H1 = 128
    H2P = 128                                       # hidden 64 padded to 128 lanes
    out_pad = _round_up(max(dim_action, 128), 128)  # lane-dense output slab

    # --- wrapper-side padding / dtype prep (fused by XLA, negligible cost)
    w1 = params["w1"].astype(jnp.bfloat16)                              # (dim_obs,128)
    b1 = params["b1"].astype(jnp.float32)                               # (1,128)
    w2 = jnp.zeros((H1, H2P), jnp.bfloat16).at[:, :64].set(
        params["w2"].astype(jnp.bfloat16))                              # (128,128)
    b2 = jnp.zeros((1, H2P), jnp.float32).at[:, :64].set(
        params["b2"].astype(jnp.float32))                               # (1,128)
    w3 = jnp.zeros((H2P, out_pad), jnp.bfloat16).at[:64, :dim_action].set(
        params["w3"].astype(jnp.bfloat16))                              # (128,out_pad)
    # Padded action lanes get a large negative bias -> tanh saturates to -1.
    b3 = jnp.full((1, out_pad), -1e4, jnp.float32).at[:, :dim_action].set(
        params["b3"].astype(jnp.float32))                               # (1,out_pad)

    obs_p = obs
    if B_pad != B:
        obs_p = jnp.zeros((B_pad, dim_obs), obs.dtype).at[:B].set(obs)
    obs_bf16 = obs_p.astype(jnp.bfloat16)

    grid = (B_pad // batch_tile,)
    full = lambda i: (0, 0)

    out = pl.pallas_call(
        actor_kernel,
        out_shape=jax.ShapeDtypeStruct((B_pad, out_pad), jnp.float32),
        grid_spec=pltpu.PrefetchScalarGridSpec(
            num_scalar_prefetch=0,
            grid=grid,
            in_specs=[
                pl.BlockSpec((batch_tile, dim_obs), lambda i: (i, 0)),
                pl.BlockSpec(w1.shape, full),
                pl.BlockSpec(b1.shape, full),
                pl.BlockSpec(w2.shape, full),
                pl.BlockSpec(b2.shape, full),
                pl.BlockSpec(w3.shape, full),
                pl.BlockSpec(b3.shape, full),
            ],
            out_specs=pl.BlockSpec((batch_tile, out_pad), lambda i: (i, 0)),
        ),
        compiler_params=pltpu.CompilerParams(
            dimension_semantics=("parallel",),
        ),
    )(obs_bf16, w1, b1, w2, b2, w3, b3)

    return out[:B, :dim_action]


def init_actor_params(key, dim_observation, dim_action):
    """Deterministic init matching torch.nn.Linear default: U(-1/sqrt(fan_in), +)."""
    ks = jax.random.split(key, 6)

    def linear(kw, kb, fan_in, fan_out):
        bound = 1.0 / jnp.sqrt(float(fan_in))
        w = jax.random.uniform(kw, (fan_in, fan_out), jnp.float32, -bound, bound)
        b = jax.random.uniform(kb, (1, fan_out), jnp.float32, -bound, bound)
        return w, b

    w1, b1 = linear(ks[0], ks[1], dim_observation, 128)
    w2, b2 = linear(ks[2], ks[3], 128, 64)
    w3, b3 = linear(ks[4], ks[5], 64, dim_action)
    return {"w1": w1, "b1": b1, "w2": w2, "b2": b2, "w3": w3, "b3": b3}


def actor_reference(obs, params):
    def lrelu(x):
        return jnp.where(x > 0, x, 0.01 * x)

    h1 = lrelu(obs @ params["w1"] + params["b1"])
    h2 = lrelu(h1 @ params["w2"] + params["b2"])
    a = jnp.tanh(h2 @ params["w3"] + params["b3"])
    a = (a + 1.0) * 0.5
    return a / jnp.sum(a, axis=-1, keepdims=True)


if __name__ == "__main__":
    key = jax.random.PRNGKey(0)
    k_obs, k_params = jax.random.split(key)

    batch = 16
    dim_observation = 32
    dim_action = 8

    obs = jax.random.normal(k_obs, (batch, dim_observation), jnp.float32)
    params = init_actor_params(k_params, dim_observation, dim_action)

    out = actor_forward(obs, params)
    out = jax.block_until_ready(out)

    ref = actor_reference(obs, params)
    assert out.shape == (batch, dim_action), out.shape
    # bf16 MXU operands => loosened tolerance vs f32 reference.
    assert jnp.allclose(out, ref, atol=1e-2, rtol=1e-2), "mismatch vs reference"
    # Each row must still be a valid (sum-to-1) action distribution.
    assert jnp.allclose(jnp.sum(out, axis=-1), 1.0, atol=1e-3), "rows not normalized"

    print("KERNEL_OK")
</pallas_src>

<mosaic_0001>
module attributes {stable_mosaic.version = 11 : i64} {
  func.func @actor_kernel(%arg0: i32, %arg1: memref<16x32xbf16, #tpu.memory_space<vmem>>, %arg2: memref<32x128xbf16, #tpu.memory_space<vmem>>, %arg3: memref<1x128xf32, #tpu.memory_space<vmem>>, %arg4: memref<128x128xbf16, #tpu.memory_space<vmem>>, %arg5: memref<1x128xf32, #tpu.memory_space<vmem>>, %arg6: memref<128x128xbf16, #tpu.memory_space<vmem>>, %arg7: memref<1x128xf32, #tpu.memory_space<vmem>>, %arg8: memref<16x128xf32, #tpu.memory_space<vmem>>) attributes {dimension_semantics = [#tpu.dimension_semantics<parallel>], iteration_bounds = array<i64: 1>, scalar_prefetch = 0 : i64, scratch_operands = 0 : i64, tpu.core_type = #tpu.core_type<tc>, window_params = [{transform_indices = @transform_0, window_bounds = array<i64: 16, 32>}, {pipeline_mode = #tpu.pipeline_mode<synchronous>, transform_indices = @transform_1, window_bounds = array<i64: 32, 128>}, {pipeline_mode = #tpu.pipeline_mode<synchronous>, transform_indices = @transform_2, window_bounds = array<i64: 1, 128>}, {pipeline_mode = #tpu.pipeline_mode<synchronous>, transform_indices = @transform_3, window_bounds = array<i64: 128, 128>}, {pipeline_mode = #tpu.pipeline_mode<synchronous>, transform_indices = @transform_4, window_bounds = array<i64: 1, 128>}, {pipeline_mode = #tpu.pipeline_mode<synchronous>, transform_indices = @transform_5, window_bounds = array<i64: 128, 128>}, {pipeline_mode = #tpu.pipeline_mode<synchronous>, transform_indices = @transform_6, window_bounds = array<i64: 1, 128>}, {transform_indices = @transform_7, window_bounds = array<i64: 16, 128>}]} {
    %c0 = arith.constant 0 : index
    %c0_0 = arith.constant 0 : index
    %0 = vector.load %arg1[%c0, %c0_0] : memref<16x32xbf16, #tpu.memory_space<vmem>>, vector<16x32xbf16>
    %c0_1 = arith.constant 0 : index
    %c0_2 = arith.constant 0 : index
    %1 = vector.load %arg2[%c0_1, %c0_2] : memref<32x128xbf16, #tpu.memory_space<vmem>>, vector<32x128xbf16>
    %cst = arith.constant dense<0.000000e+00> : vector<16x128xf32>
    %2 = tpu.matmul %0, %1, %cst {dimension_numbers = #tpu.dot_dimension_numbers<[1], [0], [0], [1], [0, 0, 1, 1], [], []>} : vector<16x32xbf16>, vector<32x128xbf16>, vector<16x128xf32> -> vector<16x128xf32>
    %c0_3 = arith.constant 0 : index
    %c0_4 = arith.constant 0 : index
    %3 = vector.load %arg3[%c0_3, %c0_4] : memref<1x128xf32, #tpu.memory_space<vmem>>, vector<1x128xf32>
    %4 = vector.broadcast %3 : vector<1x128xf32> to vector<16x128xf32>
    %5 = arith.addf %2, %4 : vector<16x128xf32>
    %cst_5 = arith.constant 0.000000e+00 : f32
    %6 = vector.broadcast %cst_5 : f32 to vector<16x128xf32>
    %7 = arith.cmpf ogt, %5, %6 : vector<16x128xf32>
    %cst_6 = arith.constant 0.00999999977 : f32
    %8 = vector.broadcast %cst_6 : f32 to vector<16x128xf32>
    %9 = arith.mulf %8, %5 : vector<16x128xf32>
    %10 = arith.select %7, %5, %9 : vector<16x128xi1>, vector<16x128xf32>
    %11 = arith.truncf %10 : vector<16x128xf32> to vector<16x128xbf16>
    %c0_7 = arith.constant 0 : index
    %c0_8 = arith.constant 0 : index
    %12 = vector.load %arg4[%c0_7, %c0_8] : memref<128x128xbf16, #tpu.memory_space<vmem>>, vector<128x128xbf16>
    %cst_9 = arith.constant dense<0.000000e+00> : vector<16x128xf32>
    %13 = tpu.matmul %11, %12, %cst_9 {dimension_numbers = #tpu.dot_dimension_numbers<[1], [0], [0], [1], [0, 0, 1, 1], [], []>} : vector<16x128xbf16>, vector<128x128xbf16>, vector<16x128xf32> -> vector<16x128xf32>
    %c0_10 = arith.constant 0 : index
    %c0_11 = arith.constant 0 : index
    %14 = vector.load %arg5[%c0_10, %c0_11] : memref<1x128xf32, #tpu.memory_space<vmem>>, vector<1x128xf32>
    %15 = vector.broadcast %14 : vector<1x128xf32> to vector<16x128xf32>
    %16 = arith.addf %13, %15 : vector<16x128xf32>
    %cst_12 = arith.constant 0.000000e+00 : f32
    %17 = vector.broadcast %cst_12 : f32 to vector<16x128xf32>
    %18 = arith.cmpf ogt, %16, %17 : vector<16x128xf32>
    %cst_13 = arith.constant 0.00999999977 : f32
    %19 = vector.broadcast %cst_13 : f32 to vector<16x128xf32>
    %20 = arith.mulf %19, %16 : vector<16x128xf32>
    %21 = arith.select %18, %16, %20 : vector<16x128xi1>, vector<16x128xf32>
    %22 = arith.truncf %21 : vector<16x128xf32> to vector<16x128xbf16>
    %c0_14 = arith.constant 0 : index
    %c0_15 = arith.constant 0 : index
    %23 = vector.load %arg6[%c0_14, %c0_15] : memref<128x128xbf16, #tpu.memory_space<vmem>>, vector<128x128xbf16>
    %cst_16 = arith.constant dense<0.000000e+00> : vector<16x128xf32>
    %24 = tpu.matmul %22, %23, %cst_16 {dimension_numbers = #tpu.dot_dimension_numbers<[1], [0], [0], [1], [0, 0, 1, 1], [], []>} : vector<16x128xbf16>, vector<128x128xbf16>, vector<16x128xf32> -> vector<16x128xf32>
    %c0_17 = arith.constant 0 : index
    %c0_18 = arith.constant 0 : index
    %25 = vector.load %arg7[%c0_17, %c0_18] : memref<1x128xf32, #tpu.memory_space<vmem>>, vector<1x128xf32>
    %26 = vector.broadcast %25 : vector<1x128xf32> to vector<16x128xf32>
    %27 = arith.addf %24, %26 : vector<16x128xf32>
    %28 = math.tanh %27 : vector<16x128xf32>
    %cst_19 = arith.constant 1.000000e+00 : f32
    %29 = vector.broadcast %cst_19 : f32 to vector<16x128xf32>
    %30 = arith.addf %28, %29 : vector<16x128xf32>
    %cst_20 = arith.constant 5.000000e-01 : f32
    %31 = vector.broadcast %cst_20 : f32 to vector<16x128xf32>
    %32 = arith.mulf %30, %31 : vector<16x128xf32>
    %cst_21 = arith.constant dense<0.000000e+00> : vector<16xf32>
    %33 = vector.multi_reduction <add>, %32, %cst_21 [1] : vector<16x128xf32> to vector<16xf32>
    %34 = vector.shape_cast %33 : vector<16xf32> to vector<16x1xf32>
    %35 = vector.broadcast %34 : vector<16x1xf32> to vector<16x128xf32>
    %36 = arith.divf %32, %35 : vector<16x128xf32>
    %c0_22 = arith.constant 0 : index
    %c0_23 = arith.constant 0 : index
    %37 = vector.load %arg8[%c0_22, %c0_23] : memref<16x128xf32, #tpu.memory_space<vmem>>, vector<16x128xf32>
    tpu.vector_store %arg8[%c0_22, %c0_23], %36 {strides = array<i32>} : memref<16x128xf32, #tpu.memory_space<vmem>>, vector<16x128xf32>,
    return
  }
  func.func @transform_0(%arg0: i32) -> (i32, i32) {
    %c0_i32 = arith.constant 0 : i32
    %c0_i32_0 = arith.constant 0 : i32
    return %arg0, %c0_i32 : i32, i32
  }
  func.func @transform_1(%arg0: i32) -> (i32, i32) {
    %c0_i32 = arith.constant 0 : i32
    %c0_i32_0 = arith.constant 0 : i32
    %c0_i32_1 = arith.constant 0 : i32
    return %c0_i32, %c0_i32_0 : i32, i32
  }
  func.func @transform_2(%arg0: i32) -> (i32, i32) {
    %c0_i32 = arith.constant 0 : i32
    %c0_i32_0 = arith.constant 0 : i32
    %c0_i32_1 = arith.constant 0 : i32
    return %c0_i32, %c0_i32_0 : i32, i32
  }
  func.func @transform_3(%arg0: i32) -> (i32, i32) {
    %c0_i32 = arith.constant 0 : i32
    %c0_i32_0 = arith.constant 0 : i32
    %c0_i32_1 = arith.constant 0 : i32
    return %c0_i32, %c0_i32_0 : i32, i32
  }
  func.func @transform_4(%arg0: i32) -> (i32, i32) {
    %c0_i32 = arith.constant 0 : i32
    %c0_i32_0 = arith.constant 0 : i32
    %c0_i32_1 = arith.constant 0 : i32
    return %c0_i32, %c0_i32_0 : i32, i32
  }
  func.func @transform_5(%arg0: i32) -> (i32, i32) {
    %c0_i32 = arith.constant 0 : i32
    %c0_i32_0 = arith.constant 0 : i32
    %c0_i32_1 = arith.constant 0 : i32
    return %c0_i32, %c0_i32_0 : i32, i32
  }
  func.func @transform_6(%arg0: i32) -> (i32, i32) {
    %c0_i32 = arith.constant 0 : i32
    %c0_i32_0 = arith.constant 0 : i32
    %c0_i32_1 = arith.constant 0 : i32
    return %c0_i32, %c0_i32_0 : i32, i32
  }
  func.func @transform_7(%arg0: i32) -> (i32, i32) {
    %c0_i32 = arith.constant 0 : i32
    %c0_i32_0 = arith.constant 0 : i32
    return %arg0, %c0_i32 : i32, i32
  }
}

</mosaic_0001>

<llo_original>
// kernel: actor_forward.1
$region0: #{actor_forward.1}
  #allocation0 [shape = 'u32[]', space=smem, size = 0x4, offset = 0x4, fixed_abs, tag = 'smem constant byte address 0x4 - core index']
  #allocation1 [shape = 'u32[144,128]{1,0:T(1,128)}', space=vmem, size = 0x12000, scoped, tag = 'internal scratch']
  %s0 = inlined_call_operand.vmem [shape: bf16[16,32], index: 0, kind: input, shape index: {}]
  %s1 = inlined_call_operand.vmem [shape: bf16[32,128], index: 1, kind: input, shape index: {}]
  %s2 = inlined_call_operand.vmem [shape: f32[1,128], index: 2, kind: input, shape index: {}]
  %s3 = inlined_call_operand.vmem [shape: bf16[128,128], index: 3, kind: input, shape index: {}]
  %s4 = inlined_call_operand.vmem [shape: f32[1,128], index: 4, kind: input, shape index: {}]
  %s5 = inlined_call_operand.vmem [shape: bf16[128,128], index: 5, kind: input, shape index: {}]
  %s6 = inlined_call_operand.vmem [shape: f32[1,128], index: 6, kind: input, shape index: {}]
  %s7 = inlined_call_operand.vmem [shape: f32[16,128], index: 7, kind: output, shape index: {}]
  %s8 = sld [smem:[#allocation0]]
  $region38: #{actor_forward.1} parent=0
    _
  %s10 = ssub.s32 1, %s8
  %s11 = scalar_select 0, %s10, %s8
  // Predicated region
  $region2: #{actor_forward.1} parent=0 // pred_check
    _
  $region3: #{actor_forward.1} parent=0 // pred_check_branch
    %13 = sbr.rel (0) target = $region5
  $region4: #{actor_forward.1} parent=0 // pred_region
    _
  $region5: #{actor_forward.1} parent=0 // pred_fallthru
    _
  // Predicated region
  $region6: #{actor_forward.1} parent=0 // pred_check
    _
  $region7: #{actor_forward.1} parent=0 // pred_check_branch
    %15 = sbr.rel (0) target = $region9
  $region8: #{actor_forward.1} parent=0 // pred_region
    _
  $region9: #{actor_forward.1} parent=0 // pred_fallthru
    _
  // Predicated region
  $region10: #{actor_forward.1} parent=0 // pred_check
    _
  $region11: #{actor_forward.1} parent=0 // pred_check_branch
    %17 = sbr.rel (0) target = $region13
  $region12: #{actor_forward.1} parent=0 // pred_region
    _
  $region13: #{actor_forward.1} parent=0 // pred_fallthru
    _
  // Predicated region
  $region14: #{actor_forward.1} parent=0 // pred_check
    _
  $region15: #{actor_forward.1} parent=0 // pred_check_branch
    %19 = sbr.rel (0) target = $region17
  $region16: #{actor_forward.1} parent=0 // pred_region
    _
  $region17: #{actor_forward.1} parent=0 // pred_fallthru
    _
  // Predicated region
  $region18: #{actor_forward.1} parent=0 // pred_check
    _
  $region19: #{actor_forward.1} parent=0 // pred_check_branch
    %21 = sbr.rel (0) target = $region21
  $region20: #{actor_forward.1} parent=0 // pred_region
    _
  $region21: #{actor_forward.1} parent=0 // pred_fallthru
    _
  // Predicated region
  $region22: #{actor_forward.1} parent=0 // pred_check
    _
  $region23: #{actor_forward.1} parent=0 // pred_check_branch
    %23 = sbr.rel (0) target = $region25
  $region24: #{actor_forward.1} parent=0 // pred_region
    _
  $region25: #{actor_forward.1} parent=0 // pred_fallthru
    _
  // Predicated region
  $region26: #{actor_forward.1} parent=0 // pred_check
    _
  $region27: #{actor_forward.1} parent=0 // pred_check_branch
    %25 = sbr.rel (0) target = $region29
  $region28: #{actor_forward.1} parent=0 // pred_region
    _
  $region29: #{actor_forward.1} parent=0 // pred_fallthru
    _
  %v27 = vld [vmem:[%s0] sm:$0xf]
  %v28 = vld [vmem:[%s0 + $0x4] sm:$0xf]
  %v29 = vld [vmem:[%s1] sm:$0xf]
  %v30 = vld [vmem:[%s1 + $0x4] sm:$0xf]
  %v31 = vld [vmem:[%s1 + $0x8] sm:$0xf]
  %v32 = vld [vmem:[%s1 + $0xc] sm:$0xf]
  %v33 = vld [vmem:[%s2] sm:$0x1]
  %v35 = vlaneseq
  %v36 = vshrl.u32 %v35, 7
  %v37 = vsub.s32 0, %v36
  %v38 = vrot.slane %v33, %v37
  %v42 = vunpack.c.l.b16 %v27
  %v43 = vunpack.c.l.b16 %v28
  %v44 = vpack.c.b16 %v43, %v42
  %v49 = vunpack.c.l.b16 %v29
  %v50 = vunpack.c.l.b16 %v30
  %v51 = vunpack.c.l.b16 %v31
  %v52 = vunpack.c.l.b16 %v32
  %v53 = vpack.c.b16 %v50, %v49
  %v54 = vpack.c.b16 %v52, %v51
  %vm57 = vcmask 261120
  %v59 = vsel %vm57, %v44, 0
  %61 = vmatprep.subr.bf16.mxu0 0
  %62 = vmatpush1.bf16.msra.mxu0 0
  %63 = vmatprep.subr.bf16.mxu0 0
  %64 = vmatpush1.bf16.msra.mxu0 0
  %65 = vmatprep.subr.bf16.mxu0 0
  %66 = vmatpush1.bf16.msra.mxu0 0
  %67 = vmatprep.subr.bf16.mxu0 0
  %68 = vmatpush1.bf16.msra.mxu0 0
  %69 = vmatprep.subr.bf16.mxu0 0
  %70 = vmatpush1.bf16.msra.mxu0 0
  %71 = vmatprep.subr.bf16.mxu0 0
  %72 = vmatpush1.bf16.msra.mxu0 0
  %73 = vmatprep.subr.bf16.mxu0 0
  %74 = vmatpush1.bf16.msra.mxu0 %v54
  %75 = vmatprep.subr.bf16.mxu0 0
  %76 = vmatpush1.bf16.msra.mxu0 %v53
  %77 = vmatprep.subr.bf16.mxu0 0
  %78 = vmatpush2.bf16.msra.mxu0 0
  %79 = vmatprep.subr.bf16.mxu0 0
  %80 = vmatpush2.bf16.msra.mxu0 0
  %81 = vmatprep.subr.bf16.mxu0 0
  %82 = vmatpush2.bf16.msra.mxu0 0
  %83 = vmatprep.subr.bf16.mxu0 0
  %84 = vmatpush2.bf16.msra.mxu0 0
  %85 = vmatprep.subr.bf16.mxu0 0
  %86 = vmatpush2.bf16.msra.mxu0 0
  %87 = vmatprep.subr.bf16.mxu0 0
  %88 = vmatpush2.bf16.msra.mxu0 0
  %89 = vmatprep.subr.bf16.mxu0 0
  %90 = vmatpush2.bf16.msra.mxu0 0
  %91 = vmatprep.subr.bf16.mxu0 0
  %92 = vmatpush2.bf16.msra.mxu0 0
  %93 = vmatprep.mubr.bf16.mxu0 0
  %94 = vmatmul.mubr.bf16.gmra.mxu0 %v59
  %v95 = vpop.f32.mrf.mxu0
  %v96 = vadd.f32 %v38, %v95
  %v97 = vpop.f32.mrf.mxu0
  %v98 = vpop.f32.mrf.mxu0
  %v99 = vadd.f32 %v38, %v98
  %v100 = vpop.f32.mrf.mxu0
  %101 = vdwg.mxu0
  %vm102 = vcmp.gt.f32.partialorder %v96, 0.0
  %vm103 = vcmp.gt.f32.partialorder %v99, 0.0
  %v104 = vmul.f32 %v96, 0.01
  %v105 = vmul.f32 %v99, 0.01
  %v106 = vsel %vm102, %v96, %v104
  %v107 = vsel %vm103, %v99, %v105
  %v108 = vpack.c.bf16 %v107, %v106
  %v109 = vld [vmem:[%s3] sm:$0xf]
  %v110 = vld [vmem:[%s3 + $0x4] sm:$0xf]
  %v111 = vld [vmem:[%s3 + $0x8] sm:$0xf]
  %v112 = vld [vmem:[%s3 + $0xc] sm:$0xf]
  %v113 = vld [vmem:[%s3 + $0x10] sm:$0xf]
  %v114 = vld [vmem:[%s3 + $0x14] sm:$0xf]
  %v115 = vld [vmem:[%s3 + $0x18] sm:$0xf]
  %v116 = vld [vmem:[%s3 + $0x1c] sm:$0xf]
  %v117 = vld [vmem:[%s3 + $0x20] sm:$0xf]
  %v118 = vld [vmem:[%s3 + $0x24] sm:$0xf]
  %v119 = vld [vmem:[%s3 + $0x28] sm:$0xf]
  %v120 = vld [vmem:[%s3 + $0x2c] sm:$0xf]
  %v121 = vld [vmem:[%s3 + $0x30] sm:$0xf]
  %v122 = vld [vmem:[%s3 + $0x34] sm:$0xf]
  %v123 = vld [vmem:[%s3 + $0x38] sm:$0xf]
  %v124 = vld [vmem:[%s3 + $0x3c] sm:$0xf]
  %v125 = vld [vmem:[%s4] sm:$0x1]
  %v127 = vlaneseq
  %v128 = vshrl.u32 %v127, 7
  %v129 = vsub.s32 0, %v128
  %v130 = vrot.slane %v125, %v129
  %v148 = vunpack.c.l.b16 %v109
  %v149 = vunpack.c.l.b16 %v110
  %v150 = vunpack.c.l.b16 %v111
  %v151 = vunpack.c.l.b16 %v112
  %v152 = vunpack.c.l.b16 %v113
  %v153 = vunpack.c.l.b16 %v114
  %v154 = vunpack.c.l.b16 %v115
  %v155 = vunpack.c.l.b16 %v116
  %v156 = vunpack.c.l.b16 %v117
  %v157 = vunpack.c.l.b16 %v118
  %v158 = vunpack.c.l.b16 %v119
  %v159 = vunpack.c.l.b16 %v120
  %v160 = vunpack.c.l.b16 %v121
  %v161 = vunpack.c.l.b16 %v122
  %v162 = vunpack.c.l.b16 %v123
  %v163 = vunpack.c.l.b16 %v124
  %v164 = vpack.c.b16 %v149, %v148
  %v165 = vpack.c.b16 %v151, %v150
  %v166 = vpack.c.b16 %v153, %v152
  %v167 = vpack.c.b16 %v155, %v154
  %v168 = vpack.c.b16 %v157, %v156
  %v169 = vpack.c.b16 %v159, %v158
  %v170 = vpack.c.b16 %v161, %v160
  %v171 = vpack.c.b16 %v163, %v162
  %180 = vmatprep.subr.bf16.mxu0 0
  %181 = vmatpush1.bf16.msra.mxu0 %v171
  %182 = vmatprep.subr.bf16.mxu0 0
  %183 = vmatpush1.bf16.msra.mxu0 %v170
  %184 = vmatprep.subr.bf16.mxu0 0
  %185 = vmatpush1.bf16.msra.mxu0 %v169
  %186 = vmatprep.subr.bf16.mxu0 0
  %187 = vmatpush1.bf16.msra.mxu0 %v168
  %188 = vmatprep.subr.bf16.mxu0 0
  %189 = vmatpush1.bf16.msra.mxu0 %v167
  %190 = vmatprep.subr.bf16.mxu0 0
  %191 = vmatpush1.bf16.msra.mxu0 %v166
  %192 = vmatprep.subr.bf16.mxu0 0
  %193 = vmatpush1.bf16.msra.mxu0 %v165
  %194 = vmatprep.subr.bf16.mxu0 0
  %195 = vmatpush1.bf16.msra.mxu0 %v164
  %196 = vmatprep.subr.bf16.mxu0 0
  %197 = vmatpush2.bf16.msra.mxu0 0
  %198 = vmatprep.subr.bf16.mxu0 0
  %199 = vmatpush2.bf16.msra.mxu0 0
  %200 = vmatprep.subr.bf16.mxu0 0
  %201 = vmatpush2.bf16.msra.mxu0 0
  %202 = vmatprep.subr.bf16.mxu0 0
  %203 = vmatpush2.bf16.msra.mxu0 0
  %204 = vmatprep.subr.bf16.mxu0 0
  %205 = vmatpush2.bf16.msra.mxu0 0
  %206 = vmatprep.subr.bf16.mxu0 0
  %207 = vmatpush2.bf16.msra.mxu0 0
  %208 = vmatprep.subr.bf16.mxu0 0
  %209 = vmatpush2.bf16.msra.mxu0 0
  %210 = vmatprep.subr.bf16.mxu0 0
  %211 = vmatpush2.bf16.msra.mxu0 0
  %212 = vmatprep.mubr.bf16.mxu0 0
  %213 = vmatmul.mubr.bf16.gmra.mxu0 %v108
  %v214 = vpop.f32.mrf.mxu0
  %v215 = vadd.f32 %v130, %v214
  %v216 = vpop.f32.mrf.mxu0
  %v217 = vpop.f32.mrf.mxu0
  %v218 = vadd.f32 %v130, %v217
  %v219 = vpop.f32.mrf.mxu0
  %220 = vdwg.mxu0
  %vm221 = vcmp.gt.f32.partialorder %v215, 0.0
  %vm222 = vcmp.gt.f32.partialorder %v218, 0.0
  %v223 = vmul.f32 %v215, 0.01
  %v224 = vmul.f32 %v218, 0.01
  %v225 = vsel %vm221, %v215, %v223
  %v226 = vsel %vm222, %v218, %v224
  %v227 = vpack.c.bf16 %v226, %v225
  %v228 = vld [vmem:[%s5] sm:$0xf]
  %v229 = vld [vmem:[%s5 + $0x4] sm:$0xf]
  %v230 = vld [vmem:[%s5 + $0x8] sm:$0xf]
  %v231 = vld [vmem:[%s5 + $0xc] sm:$0xf]
  %v232 = vld [vmem:[%s5 + $0x10] sm:$0xf]
  %v233 = vld [vmem:[%s5 + $0x14] sm:$0xf]
  %v234 = vld [vmem:[%s5 + $0x18] sm:$0xf]
  %v235 = vld [vmem:[%s5 + $0x1c] sm:$0xf]
  %v236 = vld [vmem:[%s5 + $0x20] sm:$0xf]
  %v237 = vld [vmem:[%s5 + $0x24] sm:$0xf]
  %v238 = vld [vmem:[%s5 + $0x28] sm:$0xf]
  %v239 = vld [vmem:[%s5 + $0x2c] sm:$0xf]
  %v240 = vld [vmem:[%s5 + $0x30] sm:$0xf]
  %v241 = vld [vmem:[%s5 + $0x34] sm:$0xf]
  %v242 = vld [vmem:[%s5 + $0x38] sm:$0xf]
  %v243 = vld [vmem:[%s5 + $0x3c] sm:$0xf]
  %v244 = vld [vmem:[%s6] sm:$0x1]
  %v246 = vlaneseq
  %v247 = vshrl.u32 %v246, 7
  %v248 = vsub.s32 0, %v247
  %v249 = vrot.slane %v244, %v248
  %v267 = vunpack.c.l.b16 %v228
  %v268 = vunpack.c.l.b16 %v229
  %v269 = vunpack.c.l.b16 %v230
  %v270 = vunpack.c.l.b16 %v231
  %v271 = vunpack.c.l.b16 %v232
  %v272 = vunpack.c.l.b16 %v233
  %v273 = vunpack.c.l.b16 %v234
  %v274 = vunpack.c.l.b16 %v235
  %v275 = vunpack.c.l.b16 %v236
  %v276 = vunpack.c.l.b16 %v237
  %v277 = vunpack.c.l.b16 %v238
  %v278 = vunpack.c.l.b16 %v239
  %v279 = vunpack.c.l.b16 %v240
  %v280 = vunpack.c.l.b16 %v241
  %v281 = vunpack.c.l.b16 %v242
  %v282 = vunpack.c.l.b16 %v243
  %v283 = vpack.c.b16 %v268, %v267
  %v284 = vpack.c.b16 %v270, %v269
  %v285 = vpack.c.b16 %v272, %v271
  %v286 = vpack.c.b16 %v274, %v273
  %v287 = vpack.c.b16 %v276, %v275
  %v288 = vpack.c.b16 %v278, %v277
  %v289 = vpack.c.b16 %v280, %v279
  %v290 = vpack.c.b16 %v282, %v281
  %299 = vmatprep.subr.bf16.mxu0 0
  %300 = vmatpush1.bf16.msra.mxu0 %v290
  %301 = vmatprep.subr.bf16.mxu0 0
  %302 = vmatpush1.bf16.msra.mxu0 %v289
  %303 = vmatprep.subr.bf16.mxu0 0
  %304 = vmatpush1.bf16.msra.mxu0 %v288
  %305 = vmatprep.subr.bf16.mxu0 0
  %306 = vmatpush1.bf16.msra.mxu0 %v287
  %307 = vmatprep.subr.bf16.mxu0 0
  %308 = vmatpush1.bf16.msra.mxu0 %v286
  %309 = vmatprep.subr.bf16.mxu0 0
  %310 = vmatpush1.bf16.msra.mxu0 %v285
  %311 = vmatprep.subr.bf16.mxu0 0
  %312 = vmatpush1.bf16.msra.mxu0 %v284
  %313 = vmatprep.subr.bf16.mxu0 0
  %314 = vmatpush1.bf16.msra.mxu0 %v283
  %315 = vmatprep.subr.bf16.mxu0 0
  %316 = vmatpush2.bf16.msra.mxu0 0
  %317 = vmatprep.subr.bf16.mxu0 0
  %318 = vmatpush2.bf16.msra.mxu0 0
  %319 = vmatprep.subr.bf16.mxu0 0
  %320 = vmatpush2.bf16.msra.mxu0 0
  %321 = vmatprep.subr.bf16.mxu0 0
  %322 = vmatpush2.bf16.msra.mxu0 0
  %323 = vmatprep.subr.bf16.mxu0 0
  %324 = vmatpush2.bf16.msra.mxu0 0
  %325 = vmatprep.subr.bf16.mxu0 0
  %326 = vmatpush2.bf16.msra.mxu0 0
  %327 = vmatprep.subr.bf16.mxu0 0
  %328 = vmatpush2.bf16.msra.mxu0 0
  %329 = vmatprep.subr.bf16.mxu0 0
  %330 = vmatpush2.bf16.msra.mxu0 0
  %331 = vmatprep.mubr.bf16.mxu0 0
  %332 = vmatmul.mubr.bf16.gmra.mxu0 %v227
  %v333 = vpop.f32.mrf.mxu0
  %v334 = vadd.f32 %v249, %v333
  %v335 = vpop.f32.mrf.mxu0
  %v336 = vpop.f32.mrf.mxu0
  %v337 = vadd.f32 %v249, %v336
  %v338 = vpop.f32.mrf.mxu0
  %339 = vdwg.mxu0
  %v340 = vtanh.pop %v334
  %v341 = vtanh.pop %v337
  %v342 = vadd.f32 %v340, 1.0
  %v343 = vadd.f32 %v341, 1.0
  %v344 = vmul.f32 %v342, 0.5
  %v345 = vmul.f32 %v343, 0.5
  %346 = vadd.xlane.f32.xlu0 %v344
  %v347 = vpop.xlane.xlu0 %346
  %348 = vadd.xlane.f32.xlu0 %v345
  %v349 = vpop.xlane.xlu0 %348
  %v350 = vrcp.pop %v347
  %v351 = vmul.f32 %v344, %v350
  %v352 = vrcp.pop %v349
  %v353 = vmul.f32 %v345, %v352
  %354 = vst [vmem:[%s7] sm:$0xff] %v351
  %355 = vst [vmem:[%s7 + $0x8] sm:$0xff] %v353
  // Predicated region
  $region30: #{actor_forward.1} parent=0 // pred_check
    _
  $region31: #{actor_forward.1} parent=0 // pred_check_branch
    %357 = sbr.rel (0) target = $region33
  $region32: #{actor_forward.1} parent=0 // pred_region
    _
  $region33: #{actor_forward.1} parent=0 // pred_fallthru
    _
  // Predicated region
  $region34: #{actor_forward.1} parent=0 // pred_check
    _
  $region35: #{actor_forward.1} parent=0 // pred_check_branch
    %359 = sbr.rel (0) target = $region37
  $region36: #{actor_forward.1} parent=0 // pred_region
    _
  $region37: #{actor_forward.1} parent=0 // pred_fallthru
    _

</llo_original>
